<compile_context>
chip_gen: v5e
topology: v5e:2x2
jax: 0.10.0
libtpu: 0.0.40
codegen_flags: <defaults>
</compile_context>

<pallas_src>
import functools

import jax
import jax.numpy as jnp
from jax.experimental import pallas as pl
from jax.experimental.pallas import tpu as pltpu


def _round_up(x, m):
    return ((x + m - 1) // m) * m


# ---------------------------------------------------------------------------
# Pallas kernel: whole VAL hot path as fused bf16 matmuls with f32 accumulation.
# ---------------------------------------------------------------------------
def val_kernel(xin_ref, w_in_ref, w_res_ref, w_h1_ref, w_h2_ref, bias_ref,
               out_ref, *, h_ch):
    f32 = jnp.float32
    bf16 = jnp.bfloat16

    xin = xin_ref[...]                                   # (ts, Kin) bf16

    be = bias_ref[0:1, :h_ch]                            # expand_bn bias (folded)
    bp = bias_ref[1:2, :h_ch]                            # pos_emb_conv bias
    br0 = bias_ref[2:3, :h_ch]                           # bn_layers[0] bias
    br1 = bias_ref[3:4, :h_ch]                           # bn_layers[1] bias
    bh1 = bias_ref[4:5, :2 * h_ch]                       # fused head-1 biases
    bh2 = bias_ref[5:6, :]                               # fused head-2 biases (padded)

    # fused stage-1: [expand_conv || pos_emb_conv] in one MXU pass (ts, 2h)
    y = jnp.dot(xin, w_in_ref[...], preferred_element_type=f32)
    # x = relu(bn(expand_conv(x))) + pos_emb_conv(rel_pos)   (dropout = identity)
    h = jnp.maximum(y[:, :h_ch] + be, 0.0) + y[:, h_ch:2 * h_ch] + bp

    # residual block (num_layers = 1)
    res = h
    h = jnp.maximum(
        jnp.dot(h.astype(bf16), w_res_ref[0], preferred_element_type=f32) + br0, 0.0)
    h = jnp.maximum(
        jnp.dot(h.astype(bf16), w_res_ref[1], preferred_element_type=f32) + br1, 0.0)
    h = res + h

    # fused AgShrink + AttShrink heads -> single lane-dense output tile (bf16)
    hh = jnp.maximum(
        jnp.dot(h.astype(bf16), w_h1_ref[...], preferred_element_type=f32) + bh1, 0.0)
    out = jnp.dot(hh.astype(bf16), w_h2_ref[...], preferred_element_type=f32) + bh2
    out_ref[...] = out.astype(out_ref.dtype)


# ---------------------------------------------------------------------------
# Host-side weight packing: fold BN scales, pad to lane-dense shapes, fuse ops.
# ---------------------------------------------------------------------------
def prepare_packed_params(params, c_in, n2j, h_ch, dim, kin_pad, out_pad):
    f32 = jnp.float32
    bf16 = jnp.bfloat16

    # fold BN scales into the preceding conv weights:  (x@W)*s == x@(W*s)
    we_f = params["we"] * params["se"]
    wr0_f = params["wr0"] * params["sr0"]
    wr1_f = params["wr1"] * params["sr1"]
    wps1_f = params["wps1"] * params["sps1"]
    was1_f = params["was1"] * params["sas1"]

    # fused stage-1 weight acts on xin = [x || rel || 0-pad] (kin_pad columns)
    w_ex = jnp.zeros((kin_pad, h_ch), f32).at[:c_in].set(we_f)
    w_pe = jnp.zeros((kin_pad, h_ch), f32).at[c_in:c_in + n2j].set(params["wp"])
    w_in = jnp.concatenate([w_ex, w_pe], axis=1).astype(bf16)    # (kin_pad, 2h)

    w_res = jnp.stack([wr0_f, wr1_f]).astype(bf16)               # (2, h, h)

    # fused heads
    w_h1 = jnp.concatenate([wps1_f, was1_f], axis=1).astype(bf16)  # (h, 2h)
    dd = dim * dim
    w_h2 = jnp.zeros((2 * h_ch, out_pad), f32)
    w_h2 = w_h2.at[:h_ch, :dd].set(params["wps"])
    w_h2 = w_h2.at[h_ch:, dd:dd + h_ch].set(params["was"])
    w_h2 = w_h2.astype(bf16)                                     # (2h, out_pad)

    def pad_row(v):
        v = v.reshape(-1)
        return jnp.zeros((out_pad,), f32).at[:v.shape[0]].set(v)

    rows = [
        pad_row(params["be"]),
        pad_row(params["bp"]),
        pad_row(params["br0"]),
        pad_row(params["br1"]),
        pad_row(jnp.concatenate([params["bps1"], params["bas1"]], axis=1)),
        pad_row(jnp.concatenate([params["bps"], params["bas"]], axis=1)),
        jnp.zeros((out_pad,), f32),
        jnp.zeros((out_pad,), f32),
    ]
    bias_pack = jnp.stack(rows)                                  # (8, out_pad) f32
    return w_in, w_res, w_h1, w_h2, bias_pack


def run_val_pallas(x_flat, rel_flat, params, *, dim, tile_s=2048):
    """x_flat: (S, C_in), rel_flat: (S, 2J). Returns f32 (ag2_flat, att_flat)."""
    S, c_in = x_flat.shape
    n2j = rel_flat.shape[1]
    h_ch = params["was"].shape[1]
    dd = dim * dim

    kin_pad = _round_up(c_in + n2j, 128)       # lane-dense combined input
    out_pad = _round_up(dd + h_ch, 128)        # lane-dense fused output

    # tile choice: 16-row granularity (bf16 sublane packing), biggest practical
    # tile, but always >= 2 grid steps when possible so v7x's two TensorCores
    # both get work on the "parallel" axis.  tile_s capped at 4096 to stay
    # inside v5e's default scoped-VMEM limit with double buffering.
    gran = 16
    tile_s = min(tile_s, 4096)
    ts = min(tile_s, _round_up(S, gran))
    if S > gran:
        ts = min(ts, _round_up(-(-S // 2), gran))
    ts = max(ts, gran) if S > 8 else _round_up(S, 8)
    S_pad = _round_up(S, ts)
    n_tiles = S_pad // ts

    # pack input directly in bf16 (no f32 HBM round trip)
    xin = jnp.zeros((S_pad, kin_pad), jnp.bfloat16)
    xin = xin.at[:S, :c_in].set(x_flat.astype(jnp.bfloat16))
    xin = xin.at[:S, c_in:c_in + n2j].set(rel_flat.astype(jnp.bfloat16))

    w_in, w_res, w_h1, w_h2, bias_pack = prepare_packed_params(
        params, c_in, n2j, h_ch, dim, kin_pad, out_pad)

    kernel = functools.partial(val_kernel, h_ch=h_ch)

    # weight/bias operands use constant index_maps -> Mosaic's pipeline keeps
    # the same VMEM block and elides re-fetch across grid steps.
    out = pl.pallas_call(
        kernel,
        out_shape=jax.ShapeDtypeStruct((S_pad, out_pad), jnp.bfloat16),
        grid=(n_tiles,),
        in_specs=[
            pl.BlockSpec((ts, kin_pad), lambda i: (i, 0)),
            pl.BlockSpec(w_in.shape, lambda i: (0, 0)),
            pl.BlockSpec(w_res.shape, lambda i: (0, 0, 0)),
            pl.BlockSpec(w_h1.shape, lambda i: (0, 0)),
            pl.BlockSpec(w_h2.shape, lambda i: (0, 0)),
            pl.BlockSpec(bias_pack.shape, lambda i: (0, 0)),
        ],
        out_specs=pl.BlockSpec((ts, out_pad), lambda i: (i, 0)),
        compiler_params=pltpu.CompilerParams(
            dimension_semantics=("parallel",)),
    )(xin, w_in, w_res, w_h1, w_h2, bias_pack)

    ag2_flat = out[:S, :dd].astype(jnp.float32)
    att_flat = out[:S, dd:dd + h_ch].astype(jnp.float32)
    return ag2_flat, att_flat


# ---------------------------------------------------------------------------
# Glue / parameter construction (unfused "PyTorch-like" params)
# ---------------------------------------------------------------------------
def fold_bn(gamma, beta, mean, var, eps=1e-5):
    scale = gamma / jnp.sqrt(var + eps)
    bias = beta - mean * scale
    return scale.reshape(1, -1), bias.reshape(1, -1)


def make_params(key, c_in, h_ch, dim, n_joints):
    ks = list(jax.random.split(key, 40))
    ki = iter(ks)

    def w(cin, cout, scale=0.1):
        return jax.random.normal(next(ki), (cin, cout), jnp.float32) * scale

    def bn(c):
        gamma = jax.random.uniform(next(ki), (c,), jnp.float32, 0.5, 1.5)
        beta = jax.random.normal(next(ki), (c,), jnp.float32) * 0.1
        mean = jax.random.normal(next(ki), (c,), jnp.float32) * 0.1
        var = jax.random.uniform(next(ki), (c,), jnp.float32, 0.5, 1.5)
        return fold_bn(gamma, beta, mean, var)

    def bias(c):
        return (jax.random.normal(next(ki), (c,), jnp.float32) * 0.1).reshape(1, -1)

    p = {}
    p["we"] = w(c_in, h_ch)
    p["se"], p["be"] = bn(h_ch)
    p["wp"] = w(2 * n_joints, h_ch)
    p["bp"] = bias(h_ch)
    p["wr0"] = w(h_ch, h_ch)
    p["sr0"], p["br0"] = bn(h_ch)
    p["wr1"] = w(h_ch, h_ch)
    p["sr1"], p["br1"] = bn(h_ch)
    p["wps1"] = w(h_ch, h_ch)
    p["sps1"], p["bps1"] = bn(h_ch)
    p["wps"] = w(h_ch, dim * dim)
    p["bps"] = bias(dim * dim)
    p["was1"] = w(h_ch, h_ch)
    p["sas1"], p["bas1"] = bn(h_ch)
    p["was"] = w(h_ch, h_ch)   # att_shrink out_channels = channels = h_ch
    p["bas"] = bias(h_ch)
    return p


@functools.partial(jax.jit, static_argnames=("dim",))
def val_forward(x, pos_2d, params, *, dim):
    """x: (B, d1, d2, T, N) with d1*d2 = in_channels; pos_2d: (B, T, J, 2, N_view).

    All pre/post layout work is kept inside this jit so it fuses around the
    pallas_call (the shipped problem size is launch/layout-overhead bound).
    """
    B = x.shape[0]
    T, N = x.shape[3], x.shape[4]
    n_view = int(round(N ** 0.5))
    c_in = x.shape[1] * x.shape[2]
    h_ch = params["was"].shape[1]

    # x.view(B, -1, T, N) -> channel-last flatten (S, C_in)
    x_bctn = x.reshape(B, c_in, T, N)
    x_flat = jnp.transpose(x_bctn, (0, 2, 3, 1)).reshape(B * T * N, c_in)

    # pos_2d -> rel_pos, exactly as the PyTorch code
    p2 = jnp.transpose(pos_2d[:, :, :, :2, :], (0, 2, 3, 1, 4))        # (B, J, 2, T, Nv)
    p2 = p2.reshape(B, -1, T, n_view)                                  # (B, 2J, T, Nv)
    rel = p2[:, :, :, :, None] - p2[:, :, :, None, :]                  # (B, 2J, T, Nv, Nv)
    rel = rel.reshape(B, -1, T, N)                                     # (B, 2J, T, N)
    rel_flat = jnp.transpose(rel, (0, 2, 3, 1)).reshape(B * T * N, -1)  # (S, 2J)

    ag2_flat, att_flat = run_val_pallas(x_flat, rel_flat, params, dim=dim)

    # back to PyTorch output layouts
    ag2 = ag2_flat.reshape(B, T, N, dim, dim)
    ag2 = jnp.transpose(ag2, (0, 3, 4, 1, 2))                          # (B, DIM, DIM, T, N)
    att = att_flat.reshape(B, T, N, h_ch // dim, dim)
    att = jnp.transpose(att, (0, 3, 4, 1, 2))                          # (B, h/DIM, DIM, T, N)
    return None, ag2, None, att                                        # (ag1, ag2, ag_rot, att)


# pure-JAX f32 reference of the same math (for a sanity check)
def val_reference(x_flat, rel_flat, p):
    relu = lambda v: jnp.maximum(v, 0.0)
    dot = functools.partial(jnp.dot, preferred_element_type=jnp.float32)
    h = relu(dot(x_flat, p["we"]) * p["se"] + p["be"])
    h = h + dot(rel_flat, p["wp"]) + p["bp"]
    res = h
    h = relu(dot(h, p["wr0"]) * p["sr0"] + p["br0"])
    h = relu(dot(h, p["wr1"]) * p["sr1"] + p["br1"])
    h = res + h
    hp = relu(dot(h, p["wps1"]) * p["sps1"] + p["bps1"])
    ag2 = dot(hp, p["wps"]) + p["bps"]
    ha = relu(dot(h, p["was1"]) * p["sas1"] + p["bas1"])
    att = dot(ha, p["was"]) + p["bas"]
    return ag2, att


if __name__ == "__main__":
    B, T, n_view, n_joints = 2, 8, 2, 17
    N = n_view * n_view
    DIM = 4                      # cfg.NETWORK.TRANSFORM_DIM
    in_channels = 32             # x arrives as (B, 8, 4, T, N) -> 8*4 = 32
    h_channels = 32              # channels

    key = jax.random.PRNGKey(0)
    kx, kp2, kparam = jax.random.split(key, 3)
    x = jax.random.normal(kx, (B, 8, 4, T, N), jnp.float32)
    pos_2d = jax.random.normal(kp2, (B, T, n_joints, 2, n_view), jnp.float32)
    params = make_params(kparam, in_channels, h_channels, DIM, n_joints)

    ag1, ag2, ag_rot, att = val_forward(x, pos_2d, params, dim=DIM)
    jax.block_until_ready((ag2, att))

    assert ag1 is None and ag_rot is None
    assert ag2.shape == (B, DIM, DIM, T, N)
    assert att.shape == (B, h_channels // DIM, DIM, T, N)

    # sanity check kernel vs plain-JAX f32 reference on the flattened layout
    # (kernel uses bf16 matmul operands / bf16 output store with f32
    # accumulation -> loose tolerance)
    c_in = x.shape[1] * x.shape[2]
    x_flat = jnp.transpose(x.reshape(B, c_in, T, N), (0, 2, 3, 1)).reshape(-1, c_in)
    p2 = jnp.transpose(pos_2d[:, :, :, :2, :], (0, 2, 3, 1, 4)).reshape(B, -1, T, n_view)
    rel = (p2[:, :, :, :, None] - p2[:, :, :, None, :]).reshape(B, -1, T, N)
    rel_flat = jnp.transpose(rel, (0, 2, 3, 1)).reshape(B * T * N, -1)
    ag2_k, att_k = run_val_pallas(x_flat, rel_flat, params, dim=DIM)
    ag2_r, att_r = val_reference(x_flat, rel_flat, params)
    assert jnp.allclose(ag2_k, ag2_r, rtol=3e-2, atol=2e-2), (
        float(jnp.max(jnp.abs(ag2_k - ag2_r))))
    assert jnp.allclose(att_k, att_r, rtol=3e-2, atol=2e-2), (
        float(jnp.max(jnp.abs(att_k - att_r))))

    print("KERNEL_OK")
</pallas_src>

<mosaic_0001>
module attributes {stable_mosaic.version = 11 : i64} {
  func.func @val_kernel(%arg0: i32, %arg1: memref<32x128xbf16, #tpu.memory_space<vmem>>, %arg2: memref<128x64xbf16, #tpu.memory_space<vmem>>, %arg3: memref<2x32x32xbf16, #tpu.memory_space<vmem>>, %arg4: memref<32x64xbf16, #tpu.memory_space<vmem>>, %arg5: memref<64x128xbf16, #tpu.memory_space<vmem>>, %arg6: memref<8x128xf32, #tpu.memory_space<vmem>>, %arg7: memref<32x128xbf16, #tpu.memory_space<vmem>>) attributes {dimension_semantics = [#tpu.dimension_semantics<parallel>], iteration_bounds = array<i64: 2>, scalar_prefetch = 0 : i64, scratch_operands = 0 : i64, tpu.core_type = #tpu.core_type<tc>, window_params = [{transform_indices = @transform_0, window_bounds = array<i64: 32, 128>}, {pipeline_mode = #tpu.pipeline_mode<synchronous>, transform_indices = @transform_1, window_bounds = array<i64: 128, 64>}, {pipeline_mode = #tpu.pipeline_mode<synchronous>, transform_indices = @transform_2, window_bounds = array<i64: 2, 32, 32>}, {pipeline_mode = #tpu.pipeline_mode<synchronous>, transform_indices = @transform_3, window_bounds = array<i64: 32, 64>}, {pipeline_mode = #tpu.pipeline_mode<synchronous>, transform_indices = @transform_4, window_bounds = array<i64: 64, 128>}, {pipeline_mode = #tpu.pipeline_mode<synchronous>, transform_indices = @transform_5, window_bounds = array<i64: 8, 128>}, {transform_indices = @transform_6, window_bounds = array<i64: 32, 128>}]} {
    %c0 = arith.constant 0 : index
    %c0_0 = arith.constant 0 : index
    %0 = vector.load %arg1[%c0, %c0_0] : memref<32x128xbf16, #tpu.memory_space<vmem>>, vector<32x128xbf16>
    %c0_1 = arith.constant 0 : index
    %c0_2 = arith.constant 0 : index
    %1 = vector.load %arg6[%c0_1, %c0_2] : memref<8x128xf32, #tpu.memory_space<vmem>>, vector<1x32xf32>
    %c1 = arith.constant 1 : index
    %c0_3 = arith.constant 0 : index
    %2 = vector.load %arg6[%c1, %c0_3] : memref<8x128xf32, #tpu.memory_space<vmem>>, vector<1x32xf32>
    %c2 = arith.constant 2 : index
    %c0_4 = arith.constant 0 : index
    %3 = vector.load %arg6[%c2, %c0_4] : memref<8x128xf32, #tpu.memory_space<vmem>>, vector<1x32xf32>
    %c3 = arith.constant 3 : index
    %c0_5 = arith.constant 0 : index
    %4 = vector.load %arg6[%c3, %c0_5] : memref<8x128xf32, #tpu.memory_space<vmem>>, vector<1x32xf32>
    %c4 = arith.constant 4 : index
    %c0_6 = arith.constant 0 : index
    %5 = vector.load %arg6[%c4, %c0_6] : memref<8x128xf32, #tpu.memory_space<vmem>>, vector<1x64xf32>
    %c5 = arith.constant 5 : index
    %c0_7 = arith.constant 0 : index
    %6 = vector.load %arg6[%c5, %c0_7] : memref<8x128xf32, #tpu.memory_space<vmem>>, vector<1x128xf32>
    %c0_8 = arith.constant 0 : index
    %c0_9 = arith.constant 0 : index
    %7 = vector.load %arg2[%c0_8, %c0_9] : memref<128x64xbf16, #tpu.memory_space<vmem>>, vector<128x64xbf16>
    %cst = arith.constant dense<0.000000e+00> : vector<32x64xf32>
    %8 = tpu.matmul %0, %7, %cst {dimension_numbers = #tpu.dot_dimension_numbers<[1], [0], [0], [1], [0, 0, 1, 1], [], []>} : vector<32x128xbf16>, vector<128x64xbf16>, vector<32x64xf32> -> vector<32x64xf32>
    %9 = vector.extract_strided_slice %8 {offsets = [0, 0], sizes = [32, 32], strides = [1, 1]} : vector<32x64xf32> to vector<32x32xf32>
    %10 = vector.broadcast %1 : vector<1x32xf32> to vector<32x32xf32>
    %11 = arith.addf %9, %10 : vector<32x32xf32>
    %cst_10 = arith.constant 0.000000e+00 : f32
    %12 = vector.broadcast %cst_10 : f32 to vector<32x32xf32>
    %13 = arith.maximumf %11, %12 : vector<32x32xf32>
    %14 = vector.extract_strided_slice %8 {offsets = [0, 32], sizes = [32, 32], strides = [1, 1]} : vector<32x64xf32> to vector<32x32xf32>
    %15 = arith.addf %13, %14 : vector<32x32xf32>
    %16 = vector.broadcast %2 : vector<1x32xf32> to vector<32x32xf32>
    %17 = arith.addf %15, %16 : vector<32x32xf32>
    %18 = arith.truncf %17 : vector<32x32xf32> to vector<32x32xbf16>
    %c0_11 = arith.constant 0 : index
    %c0_12 = arith.constant 0 : index
    %c0_13 = arith.constant 0 : index
    %19 = vector.load %arg3[%c0_11, %c0_12, %c0_13] : memref<2x32x32xbf16, #tpu.memory_space<vmem>>, vector<1x32x32xbf16>
    %20 = vector.shape_cast %19 : vector<1x32x32xbf16> to vector<32x32xbf16>
    %cst_14 = arith.constant dense<0.000000e+00> : vector<32x32xf32>
    %21 = tpu.matmul %18, %20, %cst_14 {dimension_numbers = #tpu.dot_dimension_numbers<[1], [0], [0], [1], [0, 0, 1, 1], [], []>} : vector<32x32xbf16>, vector<32x32xbf16>, vector<32x32xf32> -> vector<32x32xf32>
    %22 = vector.broadcast %3 : vector<1x32xf32> to vector<32x32xf32>
    %23 = arith.addf %21, %22 : vector<32x32xf32>
    %cst_15 = arith.constant 0.000000e+00 : f32
    %24 = vector.broadcast %cst_15 : f32 to vector<32x32xf32>
    %25 = arith.maximumf %23, %24 : vector<32x32xf32>
    %26 = arith.truncf %25 : vector<32x32xf32> to vector<32x32xbf16>
    %c1_16 = arith.constant 1 : index
    %c0_17 = arith.constant 0 : index
    %c0_18 = arith.constant 0 : index
    %27 = vector.load %arg3[%c1_16, %c0_17, %c0_18] : memref<2x32x32xbf16, #tpu.memory_space<vmem>>, vector<1x32x32xbf16>
    %28 = vector.shape_cast %27 : vector<1x32x32xbf16> to vector<32x32xbf16>
    %cst_19 = arith.constant dense<0.000000e+00> : vector<32x32xf32>
    %29 = tpu.matmul %26, %28, %cst_19 {dimension_numbers = #tpu.dot_dimension_numbers<[1], [0], [0], [1], [0, 0, 1, 1], [], []>} : vector<32x32xbf16>, vector<32x32xbf16>, vector<32x32xf32> -> vector<32x32xf32>
    %30 = vector.broadcast %4 : vector<1x32xf32> to vector<32x32xf32>
    %31 = arith.addf %29, %30 : vector<32x32xf32>
    %cst_20 = arith.constant 0.000000e+00 : f32
    %32 = vector.broadcast %cst_20 : f32 to vector<32x32xf32>
    %33 = arith.maximumf %31, %32 : vector<32x32xf32>
    %34 = arith.addf %17, %33 : vector<32x32xf32>
    %35 = arith.truncf %34 : vector<32x32xf32> to vector<32x32xbf16>
    %c0_21 = arith.constant 0 : index
    %c0_22 = arith.constant 0 : index
    %36 = vector.load %arg4[%c0_21, %c0_22] : memref<32x64xbf16, #tpu.memory_space<vmem>>, vector<32x64xbf16>
    %cst_23 = arith.constant dense<0.000000e+00> : vector<32x64xf32>
    %37 = tpu.matmul %35, %36, %cst_23 {dimension_numbers = #tpu.dot_dimension_numbers<[1], [0], [0], [1], [0, 0, 1, 1], [], []>} : vector<32x32xbf16>, vector<32x64xbf16>, vector<32x64xf32> -> vector<32x64xf32>
    %38 = vector.broadcast %5 : vector<1x64xf32> to vector<32x64xf32>
    %39 = arith.addf %37, %38 : vector<32x64xf32>
    %cst_24 = arith.constant 0.000000e+00 : f32
    %40 = vector.broadcast %cst_24 : f32 to vector<32x64xf32>
    %41 = arith.maximumf %39, %40 : vector<32x64xf32>
    %42 = arith.truncf %41 : vector<32x64xf32> to vector<32x64xbf16>
    %c0_25 = arith.constant 0 : index
    %c0_26 = arith.constant 0 : index
    %43 = vector.load %arg5[%c0_25, %c0_26] : memref<64x128xbf16, #tpu.memory_space<vmem>>, vector<64x128xbf16>
    %cst_27 = arith.constant dense<0.000000e+00> : vector<32x128xf32>
    %44 = tpu.matmul %42, %43, %cst_27 {dimension_numbers = #tpu.dot_dimension_numbers<[1], [0], [0], [1], [0, 0, 1, 1], [], []>} : vector<32x64xbf16>, vector<64x128xbf16>, vector<32x128xf32> -> vector<32x128xf32>
    %45 = vector.broadcast %6 : vector<1x128xf32> to vector<32x128xf32>
    %46 = arith.addf %44, %45 : vector<32x128xf32>
    %47 = arith.truncf %46 : vector<32x128xf32> to vector<32x128xbf16>
    %c0_28 = arith.constant 0 : index
    %c0_29 = arith.constant 0 : index
    %48 = vector.load %arg7[%c0_28, %c0_29] : memref<32x128xbf16, #tpu.memory_space<vmem>>, vector<32x128xbf16>
    tpu.vector_store %arg7[%c0_28, %c0_29], %47 {strides = array<i32>} : memref<32x128xbf16, #tpu.memory_space<vmem>>, vector<32x128xbf16>,
    return
  }
  func.func @transform_0(%arg0: i32) -> (i32, i32) {
    %c0_i32 = arith.constant 0 : i32
    %c0_i32_0 = arith.constant 0 : i32
    return %arg0, %c0_i32 : i32, i32
  }
  func.func @transform_1(%arg0: i32) -> (i32, i32) {
    %c0_i32 = arith.constant 0 : i32
    %c0_i32_0 = arith.constant 0 : i32
    %c0_i32_1 = arith.constant 0 : i32
    return %c0_i32, %c0_i32_0 : i32, i32
  }
  func.func @transform_2(%arg0: i32) -> (i32, i32, i32) {
    %c0_i32 = arith.constant 0 : i32
    %c0_i32_0 = arith.constant 0 : i32
    %c0_i32_1 = arith.constant 0 : i32
    %c0_i32_2 = arith.constant 0 : i32
    return %c0_i32, %c0_i32_0, %c0_i32_1 : i32, i32, i32
  }
  func.func @transform_3(%arg0: i32) -> (i32, i32) {
    %c0_i32 = arith.constant 0 : i32
    %c0_i32_0 = arith.constant 0 : i32
    %c0_i32_1 = arith.constant 0 : i32
    return %c0_i32, %c0_i32_0 : i32, i32
  }
  func.func @transform_4(%arg0: i32) -> (i32, i32) {
    %c0_i32 = arith.constant 0 : i32
    %c0_i32_0 = arith.constant 0 : i32
    %c0_i32_1 = arith.constant 0 : i32
    return %c0_i32, %c0_i32_0 : i32, i32
  }
  func.func @transform_5(%arg0: i32) -> (i32, i32) {
    %c0_i32 = arith.constant 0 : i32
    %c0_i32_0 = arith.constant 0 : i32
    %c0_i32_1 = arith.constant 0 : i32
    return %c0_i32, %c0_i32_0 : i32, i32
  }
  func.func @transform_6(%arg0: i32) -> (i32, i32) {
    %c0_i32 = arith.constant 0 : i32
    %c0_i32_0 = arith.constant 0 : i32
    return %arg0, %c0_i32 : i32, i32
  }
}

</mosaic_0001>

<llo_original>
// kernel: val_forward.1
$region0: #{val_forward.1}
  #allocation0 [shape = 'u32[]', space=smem, size = 0x4, offset = 0x4, fixed_abs, tag = 'smem constant byte address 0x4 - core index']
  #allocation1 [shape = 'u32[72,128]{1,0:T(1,128)}', space=vmem, size = 0x9000, scoped, tag = 'internal scratch']
  %s0 = inlined_call_operand.vmem [shape: bf16[64,128], index: 0, kind: input, shape index: {}]
  %s1 = inlined_call_operand.vmem [shape: bf16[128,64], index: 1, kind: input, shape index: {}]
  %s2 = inlined_call_operand.vmem [shape: bf16[2,32,32], index: 2, kind: input, shape index: {}]
  %s3 = inlined_call_operand.vmem [shape: bf16[32,64], index: 3, kind: input, shape index: {}]
  %s4 = inlined_call_operand.vmem [shape: bf16[64,128], index: 4, kind: input, shape index: {}]
  %s5 = inlined_call_operand.vmem [shape: f32[8,128], index: 5, kind: input, shape index: {}]
  %s6 = inlined_call_operand.vmem [shape: bf16[64,128], index: 6, kind: output, shape index: {}]
  %s7 = sld [smem:[#allocation0]]
  $region57: #{val_forward.1} parent=0
    _
  %s9 = ssub.s32 1, %s7
  %s10 = scalar_select 0, %s9, %s7
  loop: start=0, step=1, limit=4
  $region2: #{val_forward.1} parent=0 // loop_pre_header
    _
  $region3: #{val_forward.1} parent=0 // loop_header
    %s12 = sphi 0, %s16
    %p13 = scmp.ge.s32.totalorder %s12, 4
    %s22 = sphi 0, %s24
    %s25 = sphi 0, %s22
    %s26 = sphi 0, %s25
    %s42 = sphi 0, %s26
    %s46 = sphi 0, %s46
    %s48 = sphi 0, %s46
    %s49 = sphi 0, %s48
    %s63 = sphi 0, %s49
    %s67 = sphi 0, %s67
    %s69 = sphi 0, %s67
    %s70 = sphi 0, %s69
    %s84 = sphi 0, %s70
    %s88 = sphi 0, %s88
    %s90 = sphi 0, %s88
    %s91 = sphi 0, %s90
    %s105 = sphi 0, %s91
    %s109 = sphi 0, %s109
    %s111 = sphi 0, %s109
    %s112 = sphi 0, %s111
    %s126 = sphi 0, %s112
    %s130 = sphi 0, %s130
    %s132 = sphi 0, %s130
    %s133 = sphi 0, %s132
    %s147 = sphi 0, %s133
    %s153 = sphi 0, %s155
    %s156 = sphi 0, %s153
    %s157 = sphi 0, %s156
    %s173 = sphi 0, %s157
  $region4: #{val_forward.1} parent=0 // loop_header_branch
    %15 = sbr.rel (%p13) target = $region8
  $region5: #{val_forward.1} parent=0 // loop_body
    %s17 = ssub.s32 %s12, 1
    %s18 = ssub.s32 %s12, 2
    %s19 = sadd.s32 %s12, 1
    %s20 = ssub.s32 %s12, %s19
    %p21 = scmp.eq.s32.totalorder %s20, 0
    %s23 = sadd.s32 %s22, 1
    %s24 = scalar_select %p21, %s22, %s23
    %p27 = pneg %p21
    %p28 = scmp.eq.s32.totalorder %s12, 1
    %p29 = por %p27, %p28
    %p30 = scmp.ne.s32.totalorder %s22, %s25
    %p31 = scmp.eq.s32.totalorder %s12, 0
    %p32 = por %p30, %p31
    %p33 = scmp.ne.s32.totalorder %s22, %s25
    %p34 = scmp.eq.s32.totalorder %s17, 1
    %p35 = por %p33, %p34
    %p36 = scmp.ne.s32.totalorder %s25, %s26
    %p37 = scmp.eq.s32.totalorder %s17, 0
    %p38 = por %p36, %p37
    %p39 = scmp.ne.s32.totalorder %s25, %s26
    %p40 = scmp.eq.s32.totalorder %s18, 1
    %p41 = por %p39, %p40
    %p43 = scmp.ne.s32.totalorder %s26, %s42
    %p44 = scmp.eq.s32.totalorder %s18, 0
    %p45 = por %p43, %p44
    %s47 = sadd.s32 %s46, 1
    %p50 = scmp.eq.s32.totalorder %s12, 1
    %p51 = scmp.ne.s32.totalorder %s46, %s48
    %p52 = scmp.eq.s32.totalorder %s12, 0
    %p53 = por %p51, %p52
    %p54 = scmp.ne.s32.totalorder %s46, %s48
    %p55 = scmp.eq.s32.totalorder %s17, 1
    %p56 = por %p54, %p55
    %p57 = scmp.ne.s32.totalorder %s48, %s49
    %p58 = scmp.eq.s32.totalorder %s17, 0
    %p59 = por %p57, %p58
    %p60 = scmp.ne.s32.totalorder %s48, %s49
    %p61 = scmp.eq.s32.totalorder %s18, 1
    %p62 = por %p60, %p61
    %p64 = scmp.ne.s32.totalorder %s49, %s63
    %p65 = scmp.eq.s32.totalorder %s18, 0
    %p66 = por %p64, %p65
    %s68 = sadd.s32 %s67, 1
    %p71 = scmp.eq.s32.totalorder %s12, 1
    %p72 = scmp.ne.s32.totalorder %s67, %s69
    %p73 = scmp.eq.s32.totalorder %s12, 0
    %p74 = por %p72, %p73
    %p75 = scmp.ne.s32.totalorder %s67, %s69
    %p76 = scmp.eq.s32.totalorder %s17, 1
    %p77 = por %p75, %p76
    %p78 = scmp.ne.s32.totalorder %s69, %s70
    %p79 = scmp.eq.s32.totalorder %s17, 0
    %p80 = por %p78, %p79
    %p81 = scmp.ne.s32.totalorder %s69, %s70
    %p82 = scmp.eq.s32.totalorder %s18, 1
    %p83 = por %p81, %p82
    %p85 = scmp.ne.s32.totalorder %s70, %s84
    %p86 = scmp.eq.s32.totalorder %s18, 0
    %p87 = por %p85, %p86
    %s89 = sadd.s32 %s88, 1
    %p92 = scmp.eq.s32.totalorder %s12, 1
    %p93 = scmp.ne.s32.totalorder %s88, %s90
    %p94 = scmp.eq.s32.totalorder %s12, 0
    %p95 = por %p93, %p94
    %p96 = scmp.ne.s32.totalorder %s88, %s90
    %p97 = scmp.eq.s32.totalorder %s17, 1
    %p98 = por %p96, %p97
    %p99 = scmp.ne.s32.totalorder %s90, %s91
    %p100 = scmp.eq.s32.totalorder %s17, 0
    %p101 = por %p99, %p100
    %p102 = scmp.ne.s32.totalorder %s90, %s91
    %p103 = scmp.eq.s32.totalorder %s18, 1
    %p104 = por %p102, %p103
    %p106 = scmp.ne.s32.totalorder %s91, %s105
    %p107 = scmp.eq.s32.totalorder %s18, 0
    %p108 = por %p106, %p107
    %s110 = sadd.s32 %s109, 1
    %p113 = scmp.eq.s32.totalorder %s12, 1
    %p114 = scmp.ne.s32.totalorder %s109, %s111
    %p115 = scmp.eq.s32.totalorder %s12, 0
    %p116 = por %p114, %p115
    %p117 = scmp.ne.s32.totalorder %s109, %s111
    %p118 = scmp.eq.s32.totalorder %s17, 1
    %p119 = por %p117, %p118
    %p120 = scmp.ne.s32.totalorder %s111, %s112
    %p121 = scmp.eq.s32.totalorder %s17, 0
    %p122 = por %p120, %p121
    %p123 = scmp.ne.s32.totalorder %s111, %s112
    %p124 = scmp.eq.s32.totalorder %s18, 1
    %p125 = por %p123, %p124
    %p127 = scmp.ne.s32.totalorder %s112, %s126
    %p128 = scmp.eq.s32.totalorder %s18, 0
    %p129 = por %p127, %p128
    %s131 = sadd.s32 %s130, 1
    %p134 = scmp.eq.s32.totalorder %s12, 1
    %p135 = scmp.ne.s32.totalorder %s130, %s132
    %p136 = scmp.eq.s32.totalorder %s12, 0
    %p137 = por %p135, %p136
    %p138 = scmp.ne.s32.totalorder %s130, %s132
    %p139 = scmp.eq.s32.totalorder %s17, 1
    %p140 = por %p138, %p139
    %p141 = scmp.ne.s32.totalorder %s132, %s133
    %p142 = scmp.eq.s32.totalorder %s17, 0
    %p143 = por %p141, %p142
    %p144 = scmp.ne.s32.totalorder %s132, %s133
    %p145 = scmp.eq.s32.totalorder %s18, 1
    %p146 = por %p144, %p145
    %p148 = scmp.ne.s32.totalorder %s133, %s147
    %p149 = scmp.eq.s32.totalorder %s18, 0
    %p150 = por %p148, %p149
    %s151 = ssub.s32 %s12, %s19
    %p152 = scmp.eq.s32.totalorder %s151, 0
    %s154 = sadd.s32 %s153, 1
    %s155 = scalar_select %p152, %s153, %s154
    %p158 = pneg %p152
    %p159 = scmp.eq.s32.totalorder %s12, 1
    %p160 = por %p158, %p159
    %p161 = scmp.ne.s32.totalorder %s153, %s156
    %p162 = scmp.eq.s32.totalorder %s12, 0
    %p163 = por %p161, %p162
    %p164 = scmp.ne.s32.totalorder %s153, %s156
    %p165 = scmp.eq.s32.totalorder %s17, 1
    %p166 = por %p164, %p165
    %p167 = scmp.ne.s32.totalorder %s156, %s157
    %p168 = scmp.eq.s32.totalorder %s17, 0
    %p169 = por %p167, %p168
    %p170 = scmp.ne.s32.totalorder %s156, %s157
    %p171 = scmp.eq.s32.totalorder %s18, 1
    %p172 = por %p170, %p171
    %p174 = scmp.ne.s32.totalorder %s157, %s173
    %p175 = scmp.eq.s32.totalorder %s18, 0
    %p176 = por %p174, %p175
    %p177 = scmp.le.s32.totalorder 1, %s12
    %p178 = scmp.lt.s32.totalorder %s12, 3
    %p179 = pnand %p177, %p178
    %p180 = pneg %p179
    // Predicated region
    $region9: #{val_forward.1} parent=5 // pred_check
      _
    $region10: #{val_forward.1} parent=5 // pred_check_branch
      %182 = sbr.rel (%p179) target = $region12
    $region11: #{val_forward.1} parent=5 // pred_region
      %s183 = ssub.s32 %s12, 1
      // Predicated region
      $region13: #{val_forward.1} parent=11 // pred_check
        %p184 = pneg %p59
      $region14: #{val_forward.1} parent=11 // pred_check_branch
        %186 = sbr.rel (%p184) target = $region16
      $region15: #{val_forward.1} parent=11 // pred_region
        _
      $region16: #{val_forward.1} parent=11 // pred_fallthru
        _
      // Predicated region
      $region17: #{val_forward.1} parent=11 // pred_check
        %p187 = pneg %p80
      $region18: #{val_forward.1} parent=11 // pred_check_branch
        %189 = sbr.rel (%p187) target = $region20
      $region19: #{val_forward.1} parent=11 // pred_region
        _
      $region20: #{val_forward.1} parent=11 // pred_fallthru
        _
      // Predicated region
      $region21: #{val_forward.1} parent=11 // pred_check
        %p190 = pneg %p101
      $region22: #{val_forward.1} parent=11 // pred_check_branch
        %192 = sbr.rel (%p190) target = $region24
      $region23: #{val_forward.1} parent=11 // pred_region
        _
      $region24: #{val_forward.1} parent=11 // pred_fallthru
        _
      // Predicated region
      $region25: #{val_forward.1} parent=11 // pred_check
        %p193 = pneg %p122
      $region26: #{val_forward.1} parent=11 // pred_check_branch
        %195 = sbr.rel (%p193) target = $region28
      $region27: #{val_forward.1} parent=11 // pred_region
        _
      $region28: #{val_forward.1} parent=11 // pred_fallthru
        _
      // Predicated region
      $region29: #{val_forward.1} parent=11 // pred_check
        %p196 = pneg %p143
      $region30: #{val_forward.1} parent=11 // pred_check_branch
        %198 = sbr.rel (%p196) target = $region32
      $region31: #{val_forward.1} parent=11 // pred_region
        _
      $region32: #{val_forward.1} parent=11 // pred_fallthru
        _
    $region12: #{val_forward.1} parent=5 // pred_fallthru
      _
    %p199 = scmp.lt.s32.totalorder %s12, 2
    // Predicated region
    $region33: #{val_forward.1} parent=5 // pred_check
      %p200 = pneg %p199
    $region34: #{val_forward.1} parent=5 // pred_check_branch
      %202 = sbr.rel (%p200) target = $region36
    $region35: #{val_forward.1} parent=5 // pred_region
      // Predicated region
      $region37: #{val_forward.1} parent=35 // pred_check
        %p203 = pneg %p32
      $region38: #{val_forward.1} parent=35 // pred_check_branch
        %205 = sbr.rel (%p203) target = $region40
      $region39: #{val_forward.1} parent=35 // pred_region
        %s206 = smul.u32 4, %s12
        %p207 = scmp.lt.s32.totalorder %s206, 7
        %s208 = scalar_select %p207, %s206, 7
        %s209 = smul.addr %s208, 4
        %s210 = scalar_lea.vmem %s0, %s209
        %s211 = smul.u32 4, %s12
      $region40: #{val_forward.1} parent=35 // pred_fallthru
        _
    $region36: #{val_forward.1} parent=5 // pred_fallthru
      _
    %p212 = scmp.le.s32.totalorder 1, %s12
    %p213 = scmp.lt.s32.totalorder %s12, 3
    %p214 = pnand %p212, %p213
    %p215 = pneg %p214
    // Predicated region
    $region41: #{val_forward.1} parent=5 // pred_check
      _
    $region42: #{val_forward.1} parent=5 // pred_check_branch
      %217 = sbr.rel (%p214) target = $region44
    $region43: #{val_forward.1} parent=5 // pred_region
      %s218 = ssub.s32 %s12, 1
      %s219 = smul.u32 4, %s17
      %p220 = scmp.lt.s32.totalorder %s219, 7
      %s221 = scalar_select %p220, %s219, 7
      %s222 = smul.addr %s221, 4
      %s223 = scalar_lea.vmem %s0, %s222
      %p224 = pneg %p38
      %p225 = pneg %p35
      %p226 = pneg %p59
      %p227 = pneg %p56
      %p228 = pneg %p80
      %p229 = pneg %p77
      %p230 = pneg %p101
      %p231 = pneg %p98
      %p232 = pneg %p122
      %p233 = pneg %p119
      %p234 = pneg %p143
      %p235 = pneg %p140
      %p236 = pneg %p169
      %p237 = pneg %p166
      %s238 = smul.u32 4, %s17
      %p239 = scmp.lt.s32.totalorder %s238, 7
      %s240 = scalar_select %p239, %s238, 7
      %s241 = smul.addr %s240, 4
      %s242 = scalar_lea.vmem %s6, %s241
      %s243 = smul.u32 4, %s17
      %p244 = scmp.lt.s32.totalorder %s243, 7
      %s245 = scalar_select %p244, %s243, 7
      %s246 = smul.addr %s245, 4
      %s247 = scalar_lea.vmem %s0, %s246
      %s248 = smul.u32 4, %s17
      %s249 = smul.u32 4, %s17
      %p250 = scmp.lt.s32.totalorder %s249, 7
      %s251 = scalar_select %p250, %s249, 7
      %s252 = smul.addr %s251, 4
      %s253 = scalar_lea.vmem %s6, %s252
      %s254 = smul.u32 4, %s17
      %v256 = vld [vmem:[%s247] sm:$0xf]
      %v257 = vld [vmem:[%s247 + $0x4] sm:$0xf]
      %v258 = vld [vmem:[%s247 + $0x8] sm:$0xf]
      %v259 = vld [vmem:[%s247 + $0xc] sm:$0xf]
      %v260 = vld [vmem:[%s5] sm:$0x1]
      %v261 = vld [vmem:[%s5 + $0x1] sm:$0x1]
      %v262 = vld [vmem:[%s5 + $0x2] sm:$0x1]
      %v263 = vld [vmem:[%s5 + $0x3] sm:$0x1]
      %v264 = vld [vmem:[%s5 + $0x4] sm:$0x1]
      %v265 = vld [vmem:[%s5 + $0x5] sm:$0x1]
      %v266 = vld [vmem:[%s1] sm:$0xf]
      %v267 = vld [vmem:[%s1 + $0x4] sm:$0xf]
      %v268 = vld [vmem:[%s1 + $0x8] sm:$0xf]
      %v269 = vld [vmem:[%s1 + $0xc] sm:$0xf]
      %v270 = vld [vmem:[%s1 + $0x10] sm:$0xf]
      %v271 = vld [vmem:[%s1 + $0x14] sm:$0xf]
      %v272 = vld [vmem:[%s1 + $0x18] sm:$0xf]
      %v273 = vld [vmem:[%s1 + $0x1c] sm:$0xf]
      %v274 = vld [vmem:[%s1 + $0x20] sm:$0xf]
      %v275 = vld [vmem:[%s1 + $0x24] sm:$0xf]
      %v276 = vld [vmem:[%s1 + $0x28] sm:$0xf]
      %v277 = vld [vmem:[%s1 + $0x2c] sm:$0xf]
      %v278 = vld [vmem:[%s1 + $0x30] sm:$0xf]
      %v279 = vld [vmem:[%s1 + $0x34] sm:$0xf]
      %v280 = vld [vmem:[%s1 + $0x38] sm:$0xf]
      %v281 = vld [vmem:[%s1 + $0x3c] sm:$0xf]
      %v286 = vunpack.c.l.b16 %v256
      %v287 = vunpack.c.l.b16 %v257
      %v288 = vunpack.c.l.b16 %v258
      %v289 = vunpack.c.l.b16 %v259
      %v290 = vpack.c.b16 %v287, %v286
      %v291 = vpack.c.b16 %v289, %v288
      %v310 = vunpack.c.l.b16 %v266
      %v311 = vunpack.c.l.b16 %v267
      %v312 = vunpack.c.l.b16 %v268
      %v313 = vunpack.c.l.b16 %v269
      %v314 = vunpack.c.l.b16 %v270
      %v315 = vunpack.c.l.b16 %v271
      %v316 = vunpack.c.l.b16 %v272
      %v317 = vunpack.c.l.b16 %v273
      %v318 = vunpack.c.l.b16 %v274
      %v319 = vunpack.c.l.b16 %v275
      %v320 = vunpack.c.l.b16 %v276
      %v321 = vunpack.c.l.b16 %v277
      %v322 = vunpack.c.l.b16 %v278
      %v323 = vunpack.c.l.b16 %v279
      %v324 = vunpack.c.l.b16 %v280
      %v325 = vunpack.c.l.b16 %v281
      %v326 = vpack.c.b16 %v311, %v310
      %v327 = vpack.c.b16 %v313, %v312
      %v328 = vpack.c.b16 %v315, %v314
      %v329 = vpack.c.b16 %v317, %v316
      %v330 = vpack.c.b16 %v319, %v318
      %v331 = vpack.c.b16 %v321, %v320
      %v332 = vpack.c.b16 %v323, %v322
      %v333 = vpack.c.b16 %v325, %v324
      %342 = vmatpush.bf16.msra.mxu0 %v333
      %343 = vmatpush.bf16.msra.mxu0 %v332
      %344 = vmatpush.bf16.msra.mxu0 %v331
      %345 = vmatpush.bf16.msra.mxu0 %v330
      %346 = vmatpush.bf16.msra.mxu0 %v329
      %347 = vmatpush.bf16.msra.mxu0 %v328
      %348 = vmatpush.bf16.msra.mxu0 %v327
      %349 = vmatpush.bf16.msra.mxu0 %v326
      %350 = vmatmul.bf16.gmra.mxu0 %v290
      %v351 = vpop.f32.mrf.mxu0
      %v352 = vadd.f32 0.0, %v351
      %v353 = vpop.f32.mrf.mxu0
      %v354 = vadd.f32 0.0, %v353
      %355 = vmatmul.bf16.gmra.mxu0 %v291
      %v356 = vpop.f32.mrf.mxu0
      %v357 = vadd.f32 0.0, %v356
      %v358 = vpop.f32.mrf.mxu0
      %v359 = vadd.f32 0.0, %v358
      %360 = vdwg.mxu0
      %v361 = vperm.slane %v260, 0
      %v362 = vadd.f32 %v352, %v361
      %v363 = vadd.f32 %v354, %v361
      %v364 = vadd.f32 %v357, %v361
      %v365 = vadd.f32 %v359, %v361
      %v366 = vmax.f32 %v362, 0.0
      %v367 = vmax.f32 %v363, 0.0
      %v368 = vmax.f32 %v364, 0.0
      %v369 = vmax.f32 %v365, 0.0
      %374 = vrot.lane.b32.xlu0 %v352, 96
      %v375 = vpop.permute.xlu0 %374
      %376 = vrot.lane.b32.xlu0 %v354, 96
      %v377 = vpop.permute.xlu0 %376
      %378 = vrot.lane.b32.xlu0 %v357, 96
      %v379 = vpop.permute.xlu0 %378
      %380 = vrot.lane.b32.xlu0 %v359, 96
      %v381 = vpop.permute.xlu0 %380
      %v386 = vadd.f32 %v366, %v375
      %v387 = vadd.f32 %v367, %v377
      %v388 = vadd.f32 %v368, %v379
      %v389 = vadd.f32 %v369, %v381
      %v390 = vperm.slane %v261, 0
      %v391 = vadd.f32 %v386, %v390
      %v392 = vadd.f32 %v387, %v390
      %v393 = vadd.f32 %v388, %v390
      %v394 = vadd.f32 %v389, %v390
      %v395 = vpack.c.bf16 %v392, %v391
      %v396 = vpack.c.bf16 %v394, %v393
      %v397 = vld [vmem:[%s2] sm:$0xf]
      %v398 = vld [vmem:[%s2 + $0x4] sm:$0xf]
      %v399 = vld [vmem:[%s2 + $0x8] sm:$0xf]
      %v400 = vld [vmem:[%s2 + $0xc] sm:$0xf]
      %v401 = vperm.slane %v262, 0
      %v406 = vunpack.c.l.b16 %v397
      %v407 = vunpack.c.l.b16 %v398
      %v408 = vunpack.c.l.b16 %v399
      %v409 = vunpack.c.l.b16 %v400
      %v410 = vpack.c.b16 %v407, %v406
      %v411 = vpack.c.b16 %v409, %v408
      %vm414 = vcmask 261120
      %v416 = vsel %vm414, %v395, 0
      %v419 = vsel %vm414, %v396, 0
      %421 = vmatpush.bf16.msra.mxu0 0
      %422 = vmatpush.bf16.msra.mxu0 0
      %423 = vmatpush.bf16.msra.mxu0 0
      %424 = vmatpush.bf16.msra.mxu0 0
      %425 = vmatpush.bf16.msra.mxu0 0
      %426 = vmatpush.bf16.msra.mxu0 0
      %427 = vmatpush.bf16.msra.mxu0 %v411
      %428 = vmatpush.bf16.msra.mxu0 %v410
      %429 = vmatmul.bf16.gmra.mxu0 %v416
      %v430 = vpop.f32.mrf.mxu0
      %v431 = vadd.f32 %v401, %v430
      %v432 = vpop.f32.mrf.mxu0
      %v433 = vadd.f32 %v401, %v432
      %434 = vmatmul.bf16.gmra.mxu0 %v419
      %v435 = vpop.f32.mrf.mxu0
      %v436 = vadd.f32 %v401, %v435
      %v437 = vpop.f32.mrf.mxu0
      %v438 = vadd.f32 %v401, %v437
      %439 = vdwg.mxu0
      %v440 = vmax.f32 %v431, 0.0
      %v441 = vmax.f32 %v433, 0.0
      %v442 = vmax.f32 %v436, 0.0
      %v443 = vmax.f32 %v438, 0.0
      %v444 = vpack.c.bf16 %v441, %v440
      %v445 = vpack.c.bf16 %v443, %v442
      %s446 = scalar_lea.vmem %s2, 16
      %v447 = vld [vmem:[%s446] sm:$0xf]
      %v448 = vld [vmem:[%s446 + $0x4] sm:$0xf]
      %v449 = vld [vmem:[%s446 + $0x8] sm:$0xf]
      %v450 = vld [vmem:[%s446 + $0xc] sm:$0xf]
      %v451 = vperm.slane %v263, 0
      %v456 = vunpack.c.l.b16 %v447
      %v457 = vunpack.c.l.b16 %v448
      %v458 = vunpack.c.l.b16 %v449
      %v459 = vunpack.c.l.b16 %v450
      %v460 = vpack.c.b16 %v457, %v456
      %v461 = vpack.c.b16 %v459, %v458
      %v465 = vsel %vm414, %v444, 0
      %v468 = vsel %vm414, %v445, 0
      %470 = vmatpush.bf16.msra.mxu0 0
      %471 = vmatpush.bf16.msra.mxu0 0
      %472 = vmatpush.bf16.msra.mxu0 0
      %473 = vmatpush.bf16.msra.mxu0 0
      %474 = vmatpush.bf16.msra.mxu0 0
      %475 = vmatpush.bf16.msra.mxu0 0
      %476 = vmatpush.bf16.msra.mxu0 %v461
      %477 = vmatpush.bf16.msra.mxu0 %v460
      %478 = vmatmul.bf16.gmra.mxu0 %v465
      %v479 = vpop.f32.mrf.mxu0
      %v480 = vadd.f32 %v451, %v479
      %v481 = vpop.f32.mrf.mxu0
      %v482 = vadd.f32 %v451, %v481
      %483 = vmatmul.bf16.gmra.mxu0 %v468
      %v484 = vpop.f32.mrf.mxu0
      %v485 = vadd.f32 %v451, %v484
      %v486 = vpop.f32.mrf.mxu0
      %v487 = vadd.f32 %v451, %v486
      %488 = vdwg.mxu0
      %v489 = vmax.f32 %v480, 0.0
      %v490 = vmax.f32 %v482, 0.0
      %v491 = vmax.f32 %v485, 0.0
      %v492 = vmax.f32 %v487, 0.0
      %v493 = vadd.f32 %v391, %v489
      %v494 = vadd.f32 %v392, %v490
      %v495 = vadd.f32 %v393, %v491
      %v496 = vadd.f32 %v394, %v492
      %v497 = vpack.c.bf16 %v494, %v493
      %v498 = vpack.c.bf16 %v496, %v495
      %v499 = vld [vmem:[%s3] sm:$0xf]
      %v500 = vld [vmem:[%s3 + $0x4] sm:$0xf]
      %v501 = vld [vmem:[%s3 + $0x8] sm:$0xf]
      %v502 = vld [vmem:[%s3 + $0xc] sm:$0xf]
      %v503 = vperm.slane %v264, 0
      %v508 = vunpack.c.l.b16 %v499
      %v509 = vunpack.c.l.b16 %v500
      %v510 = vunpack.c.l.b16 %v501
      %v511 = vunpack.c.l.b16 %v502
      %v512 = vpack.c.b16 %v509, %v508
      %v513 = vpack.c.b16 %v511, %v510
      %v517 = vsel %vm414, %v497, 0
      %v520 = vsel %vm414, %v498, 0
      %522 = vmatpush.bf16.msra.mxu0 0
      %523 = vmatpush.bf16.msra.mxu0 0
      %524 = vmatpush.bf16.msra.mxu0 0
      %525 = vmatpush.bf16.msra.mxu0 0
      %526 = vmatpush.bf16.msra.mxu0 0
      %527 = vmatpush.bf16.msra.mxu0 0
      %528 = vmatpush.bf16.msra.mxu0 %v513
      %529 = vmatpush.bf16.msra.mxu0 %v512
      %530 = vmatmul.bf16.gmra.mxu0 %v517
      %v531 = vpop.f32.mrf.mxu0
      %v532 = vadd.f32 %v503, %v531
      %v533 = vpop.f32.mrf.mxu0
      %v534 = vadd.f32 %v503, %v533
      %535 = vmatmul.bf16.gmra.mxu0 %v520
      %v536 = vpop.f32.mrf.mxu0
      %v537 = vadd.f32 %v503, %v536
      %v538 = vpop.f32.mrf.mxu0
      %v539 = vadd.f32 %v503, %v538
      %540 = vdwg.mxu0
      %v541 = vmax.f32 %v532, 0.0
      %v542 = vmax.f32 %v534, 0.0
      %v543 = vmax.f32 %v537, 0.0
      %v544 = vmax.f32 %v539, 0.0
      %v545 = vpack.c.bf16 %v542, %v541
      %v546 = vpack.c.bf16 %v544, %v543
      %v547 = vld [vmem:[%s4] sm:$0xf]
      %v548 = vld [vmem:[%s4 + $0x4] sm:$0xf]
      %v549 = vld [vmem:[%s4 + $0x8] sm:$0xf]
      %v550 = vld [vmem:[%s4 + $0xc] sm:$0xf]
      %v551 = vld [vmem:[%s4 + $0x10] sm:$0xf]
      %v552 = vld [vmem:[%s4 + $0x14] sm:$0xf]
      %v553 = vld [vmem:[%s4 + $0x18] sm:$0xf]
      %v554 = vld [vmem:[%s4 + $0x1c] sm:$0xf]
      %v555 = vperm.slane %v265, 0
      %v564 = vunpack.c.l.b16 %v547
      %v565 = vunpack.c.l.b16 %v548
      %v566 = vunpack.c.l.b16 %v549
      %v567 = vunpack.c.l.b16 %v550
      %v568 = vunpack.c.l.b16 %v551
      %v569 = vunpack.c.l.b16 %v552
      %v570 = vunpack.c.l.b16 %v553
      %v571 = vunpack.c.l.b16 %v554
      %v572 = vpack.c.b16 %v565, %v564
      %v573 = vpack.c.b16 %v567, %v566
      %v574 = vpack.c.b16 %v569, %v568
      %v575 = vpack.c.b16 %v571, %v570
      %vm580 = vcmask 523264
      %v582 = vsel %vm580, %v545, 0
      %v585 = vsel %vm580, %v546, 0
      %587 = vmatpush.bf16.msra.mxu0 0
      %588 = vmatpush.bf16.msra.mxu0 0
      %589 = vmatpush.bf16.msra.mxu0 0
      %590 = vmatpush.bf16.msra.mxu0 0
      %591 = vmatpush.bf16.msra.mxu0 %v575
      %592 = vmatpush.bf16.msra.mxu0 %v574
      %593 = vmatpush.bf16.msra.mxu0 %v573
      %594 = vmatpush.bf16.msra.mxu0 %v572
      %595 = vmatmul.bf16.gmra.mxu0 %v582
      %v596 = vpop.f32.mrf.mxu0
      %v597 = vadd.f32 %v555, %v596
      %v598 = vpop.f32.mrf.mxu0
      %v599 = vadd.f32 %v555, %v598
      %600 = vmatmul.bf16.gmra.mxu0 %v585
      %v601 = vpop.f32.mrf.mxu0
      %v602 = vadd.f32 %v555, %v601
      %v603 = vpop.f32.mrf.mxu0
      %v604 = vadd.f32 %v555, %v603
      %605 = vdwg.mxu0
      %v606 = vpack.c.bf16 %v597, %v597
      %v607 = vpack.c.bf16 %v599, %v599
      %v608 = vpack.c.bf16 %v602, %v602
      %v609 = vpack.c.bf16 %v604, %v604
      %610 = vst [vmem:[%s253] sm:$0xf] %v606
      %611 = vst [vmem:[%s253 + $0x4] sm:$0xf] %v607
      %612 = vst [vmem:[%s253 + $0x8] sm:$0xf] %v608
      %613 = vst [vmem:[%s253 + $0xc] sm:$0xf] %v609
      %s614 = smul.u32 4, %s17
      %p615 = scmp.lt.s32.totalorder %s614, 7
      %s616 = scalar_select %p615, %s614, 7
      %s617 = smul.addr %s616, 4
      %s618 = scalar_lea.vmem %s6, %s617
      // Predicated region
      $region45: #{val_forward.1} parent=43 // pred_check
        %p619 = pneg %p166
      $region46: #{val_forward.1} parent=43 // pred_check_branch
        %621 = sbr.rel (%p619) target = $region48
      $region47: #{val_forward.1} parent=43 // pred_region
        %s622 = smul.u32 4, %s17
      $region48: #{val_forward.1} parent=43 // pred_fallthru
        _
    $region44: #{val_forward.1} parent=5 // pred_fallthru
      _
    %p623 = scmp.le.s32.totalorder 2, %s12
    // Predicated region
    $region49: #{val_forward.1} parent=5 // pred_check
      %p624 = pneg %p623
    $region50: #{val_forward.1} parent=5 // pred_check_branch
      %626 = sbr.rel (%p624) target = $region52
    $region51: #{val_forward.1} parent=5 // pred_region
      %s627 = ssub.s32 %s12, 2
      // Predicated region
      $region53: #{val_forward.1} parent=51 // pred_check
        %p628 = pneg %p172
      $region54: #{val_forward.1} parent=51 // pred_check_branch
        %630 = sbr.rel (%p628) target = $region56
      $region55: #{val_forward.1} parent=51 // pred_region
        %s631 = smul.u32 4, %s18
        %p632 = scmp.lt.s32.totalorder %s631, 7
        %s633 = scalar_select %p632, %s631, 7
        %s634 = smul.addr %s633, 4
        %s635 = scalar_lea.vmem %s6, %s634
      $region56: #{val_forward.1} parent=51 // pred_fallthru
        _
    $region52: #{val_forward.1} parent=5 // pred_fallthru
      _
  $region6: #{val_forward.1} parent=0 // loop_footer
    %s16 = sadd.s32 1, %s12
  $region7: #{val_forward.1} parent=0 // loop_footer_branch
    %11 = sbr.rel target = $region3
  $region8: #{val_forward.1} parent=0 // loop_exit
    _

</llo_original>
